<compile_context>
chip_gen: v7x
topology: tpu7x:2x2x1
jax: 0.10.0
libtpu: 0.0.40
codegen_flags: <defaults>
</compile_context>

<pallas_src>
import functools

import numpy as np
import jax
import jax.numpy as jnp
from jax.experimental import pallas as pl
from jax.experimental.pallas import tpu as pltpu

try:  # prefer scipy's solver on host if present
    from scipy.optimize import linear_sum_assignment as _scipy_lsa
except Exception:  # pragma: no cover
    _scipy_lsa = None

_FOCAL_ALPHA = 0.25  # gamma == 2 is baked in as p*p / (1-p)*(1-p)


def _round_up(x, m):
    return ((x + m - 1) // m) * m


# --------------------------------------------------------------------------- #
# Pallas kernel: one row tile of the cost matrix per grid step.
# --------------------------------------------------------------------------- #
def _matcher_cost_kernel(op_ref, tpT_ref, logits_ref, oh_ref, c_ref, *, sign_point):
    op = op_ref[...]          # (TN, D)  already |cost_point|-scaled
    tpT = tpT_ref[...]        # (D, Tp)  already |cost_point|-scaled
    D = tpT.shape[0]

    # L1 cdist: unrolled over the tiny static point dim (pure VPU broadcast work).
    cost_point = jnp.abs(op[:, 0:1] - tpT[0:1, :])
    for d in range(1, D):
        cost_point = cost_point + jnp.abs(op[:, d:d + 1] - tpT[d:d + 1, :])

    # Focal classification cost on the fused [edge|last|this] logits.
    #   -log(sigmoid(x))   = softplus(-x) = max(-x, 0) + log(1 + exp(-|x|))
    #   -log(1-sigmoid(x)) = softplus( x) = max( x, 0) + log(1 + exp(-|x|))
    # One shared exp/log pair instead of pow + log(p + eps) twice.
    x = logits_ref[...]
    t = jnp.log(1.0 + jnp.exp(-jnp.abs(x)))
    nlog_p = jnp.maximum(-x, 0.0) + t
    nlog_1mp = jnp.maximum(x, 0.0) + t
    p = jax.nn.sigmoid(x)
    q = 1.0 - p
    focal = _FOCAL_ALPHA * (q * q) * nlog_p - (1.0 - _FOCAL_ALPHA) * (p * p) * nlog_1mp

    # Class-id gather + per-head weights: one fused one-hot matmul on the MXU.
    cls_cost = jnp.dot(focal, oh_ref[...], preferred_element_type=jnp.float32)

    if sign_point >= 0:  # static Python branch (weights folded as |w|, sign applied here)
        c_ref[...] = (cls_cost + cost_point).astype(c_ref.dtype)
    else:
        c_ref[...] = (cls_cost - cost_point).astype(c_ref.dtype)


@functools.partial(
    jax.jit,
    static_argnames=("cost_point", "cost_edge", "cost_last_edge", "cost_this_edge"))
def compute_cost_matrix(out_point, tgt_point,
                        out_edge_logits, tgt_edges,
                        out_last_logits, tgt_last_edges,
                        out_this_logits, tgt_this_edges,
                        *, cost_point, cost_edge, cost_last_edge, cost_this_edge):
    """Returns C of shape (N, T) = (bs*num_queries, total_targets)."""
    N, D = out_point.shape
    T = int(tgt_point.shape[0])
    Ce = out_edge_logits.shape[1]
    Cl = out_last_logits.shape[1]
    Ct = out_this_logits.shape[1]
    Ctot = Ce + Cl + Ct

    w_p = float(cost_point)
    sign_p = 1.0 if w_p >= 0.0 else -1.0
    aw_p = abs(w_p)

    # Lane-dense target axis and 8-aligned row tiling.
    Tp = max(_round_up(T, 128), 128)
    N8 = _round_up(N, 8)
    TN = N8 if N8 <= 256 else 256
    Np = _round_up(N8, TN)

    # Point inputs: fold |cost_point| in, pad rows / target columns with zeros.
    op = jnp.asarray(out_point, jnp.float32) * aw_p
    op = jnp.pad(op, ((0, Np - N), (0, 0)))
    tpT = (jnp.asarray(tgt_point, jnp.float32) * aw_p).T                    # (D, T)
    tpT = jnp.pad(tpT, ((0, 0), (0, Tp - T)))                               # (D, Tp)

    # Fused classification logits (class axis concatenation).
    logits = jnp.concatenate(
        [jnp.asarray(out_edge_logits, jnp.float32),
         jnp.asarray(out_last_logits, jnp.float32),
         jnp.asarray(out_this_logits, jnp.float32)], axis=1)                # (N, Ctot)
    logits = jnp.pad(logits, ((0, Np - N), (0, 0)))                         # (Np, Ctot)

    # Fused one-hot gather matrix with per-head weights folded in.
    oh = jnp.concatenate(
        [float(cost_edge) * jax.nn.one_hot(tgt_edges, Ce, dtype=jnp.float32),
         float(cost_last_edge) * jax.nn.one_hot(tgt_last_edges, Cl, dtype=jnp.float32),
         float(cost_this_edge) * jax.nn.one_hot(tgt_this_edges, Ct, dtype=jnp.float32)],
        axis=1).T                                                           # (Ctot, T)
    oh = jnp.pad(oh, ((0, 0), (0, Tp - T)))                                 # (Ctot, Tp)

    kernel = functools.partial(_matcher_cost_kernel, sign_point=sign_p)

    c_pad = pl.pallas_call(
        kernel,
        out_shape=jax.ShapeDtypeStruct((Np, Tp), jnp.float32),
        grid_spec=pltpu.PrefetchScalarGridSpec(
            num_scalar_prefetch=0,
            grid=(Np // TN,),
            in_specs=[
                pl.BlockSpec((TN, D), lambda i: (i, 0)),      # out_point row tile
                pl.BlockSpec((D, Tp), lambda i: (0, 0)),      # all targets (small), resident
                pl.BlockSpec((TN, Ctot), lambda i: (i, 0)),   # fused logits row tile
                pl.BlockSpec((Ctot, Tp), lambda i: (0, 0)),   # fused weighted one-hot, resident
            ],
            out_specs=pl.BlockSpec((TN, Tp), lambda i: (i, 0)),
        ),
        compiler_params=pltpu.CompilerParams(
            dimension_semantics=("parallel",),        # shard row tiles across TCs on v7x
            vmem_limit_bytes=48 * 1024 * 1024,        # headroom for big tiles, safe on v7x (64 MiB phys)
        ),
    )(op, tpT, logits, oh)

    return c_pad[:N, :T]


# --------------------------------------------------------------------------- #
# Host-side assignment (sequential, data-dependent -> not a Pallas kernel).
# --------------------------------------------------------------------------- #
def _solve_lsap_dense(cost):
    """O(n^2*m) shortest-augmenting-path (Jonker-Volgenant style), n <= m.
    Returns col4row: column assigned to each row."""
    cost = np.asarray(cost, dtype=np.float64)
    n, m = cost.shape
    INF = np.inf
    u = np.zeros(n + 1, dtype=np.float64)
    v = np.zeros(m + 1, dtype=np.float64)
    p = np.zeros(m + 1, dtype=np.int64)     # p[j] = 1-based row assigned to column j
    way = np.zeros(m + 1, dtype=np.int64)
    for i in range(1, n + 1):
        p[0] = i
        j0 = 0
        minv = np.full(m + 1, INF, dtype=np.float64)
        used = np.zeros(m + 1, dtype=bool)
        while True:
            used[j0] = True
            i0 = p[j0]
            cur = cost[i0 - 1, :] - u[i0] - v[1:]
            better = (~used[1:]) & (cur < minv[1:])
            minv[1:] = np.where(better, cur, minv[1:])
            way[1:] = np.where(better, j0, way[1:])
            masked = np.where(used[1:], INF, minv[1:])
            j1 = int(np.argmin(masked)) + 1
            delta = masked[j1 - 1]
            np.add.at(u, p[used], delta)
            v[used] -= delta
            minv[~used] -= delta
            j0 = j1
            if p[j0] == 0:
                break
        while True:
            j1 = way[j0]
            p[j0] = p[j1]
            j0 = j1
            if j0 == 0:
                break
    col4row = np.zeros(n, dtype=np.int64)
    for j in range(1, m + 1):
        if p[j] != 0:
            col4row[p[j] - 1] = j - 1
    return col4row


def _linear_sum_assignment_np(cost):
    cost = np.asarray(cost, dtype=np.float64)
    n, m = cost.shape
    if n == 0 or m == 0:
        return np.empty(0, np.int64), np.empty(0, np.int64)
    if _scipy_lsa is not None:
        r, c = _scipy_lsa(cost)
        return np.asarray(r, np.int64), np.asarray(c, np.int64)
    if n <= m:
        col4row = _solve_lsap_dense(cost)
        return np.arange(n, dtype=np.int64), col4row.astype(np.int64)
    row4col = _solve_lsap_dense(cost.T)          # rows assigned to each column
    row_ind = row4col.astype(np.int64)
    col_ind = np.arange(m, dtype=np.int64)
    order = np.argsort(row_ind)
    return row_ind[order], col_ind[order]


# --------------------------------------------------------------------------- #
# Module wrapper mirroring the PyTorch HungarianMatcher forward.
# --------------------------------------------------------------------------- #
class HungarianMatcherPallas:
    def __init__(self, cost_point, cost_edge, cost_last_edge, cost_this_edge,
                 cost_semantic_left_up, cost_semantic_right_up,
                 cost_semantic_right_down, cost_semantic_left_down):
        self.cost_point = cost_point
        self.cost_edge = cost_edge
        self.cost_last_edge = cost_last_edge
        self.cost_this_edge = cost_this_edge
        # semantic weights stored but unused in the reference forward pass
        self.cost_semantic_left_up = cost_semantic_left_up
        self.cost_semantic_right_up = cost_semantic_right_up
        self.cost_semantic_right_down = cost_semantic_right_down
        self.cost_semantic_left_down = cost_semantic_left_down

    def __call__(self, outputs, targets):
        bs, num_queries = outputs['pred_edges'].shape[:2]

        out_point = outputs['pred_points'].reshape(bs * num_queries, -1)
        out_edge = outputs['pred_edges'].reshape(bs * num_queries, -1)
        out_last_edge = outputs['pred_last_edges'].reshape(bs * num_queries, -1)
        out_this_edge = outputs['pred_this_edges'].reshape(bs * num_queries, -1)

        tgt_point = jnp.concatenate([v['points'] for v in targets], axis=0)
        tgt_edges = jnp.concatenate([v['edges'] for v in targets], axis=0)
        tgt_last_edges = jnp.concatenate([v['last_edges'] for v in targets], axis=0)
        tgt_this_edges = jnp.concatenate([v['this_edges'] for v in targets], axis=0)

        C = compute_cost_matrix(
            out_point, tgt_point,
            out_edge, tgt_edges,
            out_last_edge, tgt_last_edges,
            out_this_edge, tgt_this_edges,
            cost_point=float(self.cost_point), cost_edge=float(self.cost_edge),
            cost_last_edge=float(self.cost_last_edge),
            cost_this_edge=float(self.cost_this_edge))

        C = jax.block_until_ready(C)
        C_np = np.asarray(C).reshape(bs, num_queries, -1)

        sizes = [int(v['points'].shape[0]) for v in targets]
        splits = np.cumsum(sizes)[:-1]
        chunks = np.split(C_np, splits, axis=-1)
        indices = [_linear_sum_assignment_np(c[i]) for i, c in enumerate(chunks)]
        return [(np.asarray(i, dtype=np.int64), np.asarray(j, dtype=np.int64))
                for i, j in indices]


if __name__ == "__main__":
    key = jax.random.PRNGKey(0)
    bs, num_queries = 2, 8
    point_dim = 2
    n_edge_cls, n_last_cls, n_this_cls = 4, 4, 4
    sizes = [5, 3]  # targets per image

    ks = jax.random.split(key, 12)
    outputs = {
        'pred_points': jax.random.uniform(ks[0], (bs, num_queries, point_dim), jnp.float32),
        'pred_edges': jax.random.normal(ks[1], (bs, num_queries, n_edge_cls), jnp.float32),
        'pred_last_edges': jax.random.normal(ks[2], (bs, num_queries, n_last_cls), jnp.float32),
        'pred_this_edges': jax.random.normal(ks[3], (bs, num_queries, n_this_cls), jnp.float32),
    }
    targets = []
    for b, n in enumerate(sizes):
        kb = jax.random.split(ks[4 + b], 4)
        targets.append({
            'points': jax.random.uniform(kb[0], (n, point_dim), jnp.float32),
            'edges': jax.random.randint(kb[1], (n,), 0, n_edge_cls),
            'last_edges': jax.random.randint(kb[2], (n,), 0, n_last_cls),
            'this_edges': jax.random.randint(kb[3], (n,), 0, n_this_cls),
        })

    matcher = HungarianMatcherPallas(
        cost_point=5.0, cost_edge=1.0, cost_last_edge=1.0, cost_this_edge=1.0,
        cost_semantic_left_up=1.0, cost_semantic_right_up=1.0,
        cost_semantic_right_down=1.0, cost_semantic_left_down=1.0)

    indices = matcher(outputs, targets)
    assert len(indices) == bs
    for (i, j), n in zip(indices, sizes):
        assert i.shape[0] == min(num_queries, n) and j.shape[0] == min(num_queries, n)
        assert len(set(i.tolist())) == i.shape[0] and len(set(j.tolist())) == j.shape[0]
    print("KERNEL_OK")
</pallas_src>

<mosaic_0001>
module attributes {stable_mosaic.version = 11 : i64} {
  func.func @_matcher_cost_kernel(%arg0: i32, %arg1: memref<16x2xf32, #tpu.memory_space<vmem>>, %arg2: memref<2x128xf32, #tpu.memory_space<vmem>>, %arg3: memref<16x12xf32, #tpu.memory_space<vmem>>, %arg4: memref<12x128xf32, #tpu.memory_space<vmem>>, %arg5: memref<16x128xf32, #tpu.memory_space<vmem>>) attributes {dimension_semantics = [#tpu.dimension_semantics<parallel>], iteration_bounds = array<i64: 1>, scalar_prefetch = 0 : i64, scratch_operands = 0 : i64, tpu.core_type = #tpu.core_type<tc>, window_params = [{transform_indices = @transform_0, window_bounds = array<i64: 16, 2>}, {pipeline_mode = #tpu.pipeline_mode<synchronous>, transform_indices = @transform_1, window_bounds = array<i64: 2, 128>}, {transform_indices = @transform_2, window_bounds = array<i64: 16, 12>}, {pipeline_mode = #tpu.pipeline_mode<synchronous>, transform_indices = @transform_3, window_bounds = array<i64: 12, 128>}, {transform_indices = @transform_4, window_bounds = array<i64: 16, 128>}]} {
    %c0 = arith.constant 0 : index
    %c0_0 = arith.constant 0 : index
    %0 = vector.load %arg1[%c0, %c0_0] : memref<16x2xf32, #tpu.memory_space<vmem>>, vector<16x2xf32>
    %c0_1 = arith.constant 0 : index
    %c0_2 = arith.constant 0 : index
    %1 = vector.load %arg2[%c0_1, %c0_2] : memref<2x128xf32, #tpu.memory_space<vmem>>, vector<2x128xf32>
    %2 = vector.extract_strided_slice %0 {offsets = [0, 0], sizes = [16, 1], strides = [1, 1]} : vector<16x2xf32> to vector<16x1xf32>
    %3 = vector.extract_strided_slice %1 {offsets = [0, 0], sizes = [1, 128], strides = [1, 1]} : vector<2x128xf32> to vector<1x128xf32>
    %4 = vector.broadcast %2 : vector<16x1xf32> to vector<16x128xf32>
    %5 = vector.broadcast %3 : vector<1x128xf32> to vector<16x128xf32>
    %6 = arith.subf %4, %5 : vector<16x128xf32>
    %7 = math.absf %6 : vector<16x128xf32>
    %8 = vector.extract_strided_slice %0 {offsets = [0, 1], sizes = [16, 1], strides = [1, 1]} : vector<16x2xf32> to vector<16x1xf32>
    %9 = vector.extract_strided_slice %1 {offsets = [1, 0], sizes = [1, 128], strides = [1, 1]} : vector<2x128xf32> to vector<1x128xf32>
    %10 = vector.broadcast %8 : vector<16x1xf32> to vector<16x128xf32>
    %11 = vector.broadcast %9 : vector<1x128xf32> to vector<16x128xf32>
    %12 = arith.subf %10, %11 : vector<16x128xf32>
    %13 = math.absf %12 : vector<16x128xf32>
    %14 = arith.addf %7, %13 : vector<16x128xf32>
    %c0_3 = arith.constant 0 : index
    %c0_4 = arith.constant 0 : index
    %15 = vector.load %arg3[%c0_3, %c0_4] : memref<16x12xf32, #tpu.memory_space<vmem>>, vector<16x12xf32>
    %16 = math.absf %15 : vector<16x12xf32>
    %cst = arith.constant 0.000000e+00 : f32
    %17 = vector.broadcast %cst : f32 to vector<16x12xf32>
    %18 = arith.subf %17, %16 : vector<16x12xf32>
    %19 = math.exp %18 : vector<16x12xf32>
    %cst_5 = arith.constant 1.000000e+00 : f32
    %20 = vector.broadcast %cst_5 : f32 to vector<16x12xf32>
    %21 = arith.addf %20, %19 : vector<16x12xf32>
    %22 = math.log %21 : vector<16x12xf32>
    %cst_6 = arith.constant 0.000000e+00 : f32
    %23 = vector.broadcast %cst_6 : f32 to vector<16x12xf32>
    %24 = arith.subf %23, %15 : vector<16x12xf32>
    %cst_7 = arith.constant 0.000000e+00 : f32
    %25 = vector.broadcast %cst_7 : f32 to vector<16x12xf32>
    %26 = arith.maximumf %24, %25 : vector<16x12xf32>
    %27 = arith.addf %26, %22 : vector<16x12xf32>
    %cst_8 = arith.constant 0.000000e+00 : f32
    %28 = vector.broadcast %cst_8 : f32 to vector<16x12xf32>
    %29 = arith.maximumf %15, %28 : vector<16x12xf32>
    %30 = arith.addf %29, %22 : vector<16x12xf32>
    %31 = arith.negf %15 : vector<16x12xf32>
    %32 = math.exp %31 : vector<16x12xf32>
    %cst_9 = arith.constant 1.000000e+00 : f32
    %33 = vector.broadcast %cst_9 : f32 to vector<16x12xf32>
    %34 = arith.addf %33, %32 : vector<16x12xf32>
    %35 = arith.divf %33, %34 : vector<16x12xf32>
    %cst_10 = arith.constant 1.000000e+00 : f32
    %36 = vector.broadcast %cst_10 : f32 to vector<16x12xf32>
    %37 = arith.subf %36, %35 : vector<16x12xf32>
    %38 = arith.mulf %37, %37 : vector<16x12xf32>
    %cst_11 = arith.constant 2.500000e-01 : f32
    %39 = vector.broadcast %cst_11 : f32 to vector<16x12xf32>
    %40 = arith.mulf %39, %38 : vector<16x12xf32>
    %41 = arith.mulf %40, %27 : vector<16x12xf32>
    %42 = arith.mulf %35, %35 : vector<16x12xf32>
    %cst_12 = arith.constant 7.500000e-01 : f32
    %43 = vector.broadcast %cst_12 : f32 to vector<16x12xf32>
    %44 = arith.mulf %43, %42 : vector<16x12xf32>
    %45 = arith.mulf %44, %30 : vector<16x12xf32>
    %46 = arith.subf %41, %45 : vector<16x12xf32>
    %c0_13 = arith.constant 0 : index
    %c0_14 = arith.constant 0 : index
    %47 = vector.load %arg4[%c0_13, %c0_14] : memref<12x128xf32, #tpu.memory_space<vmem>>, vector<12x128xf32>
    %cst_15 = arith.constant dense<0.000000e+00> : vector<16x128xf32>
    %48 = tpu.matmul %46, %47, %cst_15 {dimension_numbers = #tpu.dot_dimension_numbers<[1], [0], [0], [1], [0, 0, 1, 1], [], []>} : vector<16x12xf32>, vector<12x128xf32>, vector<16x128xf32> -> vector<16x128xf32>
    %49 = arith.addf %48, %14 : vector<16x128xf32>
    %c0_16 = arith.constant 0 : index
    %c0_17 = arith.constant 0 : index
    %50 = vector.load %arg5[%c0_16, %c0_17] : memref<16x128xf32, #tpu.memory_space<vmem>>, vector<16x128xf32>
    tpu.vector_store %arg5[%c0_16, %c0_17], %49 {strides = array<i32>} : memref<16x128xf32, #tpu.memory_space<vmem>>, vector<16x128xf32>,
    return
  }
  func.func @transform_0(%arg0: i32) -> (i32, i32) {
    %c0_i32 = arith.constant 0 : i32
    %c0_i32_0 = arith.constant 0 : i32
    return %arg0, %c0_i32 : i32, i32
  }
  func.func @transform_1(%arg0: i32) -> (i32, i32) {
    %c0_i32 = arith.constant 0 : i32
    %c0_i32_0 = arith.constant 0 : i32
    %c0_i32_1 = arith.constant 0 : i32
    return %c0_i32, %c0_i32_0 : i32, i32
  }
  func.func @transform_2(%arg0: i32) -> (i32, i32) {
    %c0_i32 = arith.constant 0 : i32
    %c0_i32_0 = arith.constant 0 : i32
    return %arg0, %c0_i32 : i32, i32
  }
  func.func @transform_3(%arg0: i32) -> (i32, i32) {
    %c0_i32 = arith.constant 0 : i32
    %c0_i32_0 = arith.constant 0 : i32
    %c0_i32_1 = arith.constant 0 : i32
    return %c0_i32, %c0_i32_0 : i32, i32
  }
  func.func @transform_4(%arg0: i32) -> (i32, i32) {
    %c0_i32 = arith.constant 0 : i32
    %c0_i32_0 = arith.constant 0 : i32
    return %arg0, %c0_i32 : i32, i32
  }
}

</mosaic_0001>

<llo_original>
// kernel: compute_cost_matrix.1
$region0: #{compute_cost_matrix.1}
  #allocation0 [shape = 'u32[]', space=smem, size = 0x4, offset = 0x4, fixed_abs, tag = 'smem constant byte address 0x4 - core index']
  #allocation1 [shape = 'u32[144,128]{1,0:T(1,128)}', space=vmem, size = 0x12000, scoped, tag = 'internal scratch']
  %s0 = inlined_call_operand.vmem [shape: f32[16,2], index: 0, kind: input, shape index: {}]
  %s1 = inlined_call_operand.vmem [shape: f32[2,128], index: 1, kind: input, shape index: {}]
  %s2 = inlined_call_operand.vmem [shape: f32[16,12], index: 2, kind: input, shape index: {}]
  %s3 = inlined_call_operand.vmem [shape: f32[12,128], index: 3, kind: input, shape index: {}]
  %s4 = inlined_call_operand.vmem [shape: f32[16,128], index: 4, kind: output, shape index: {}]
  %s5 = sld [smem:[#allocation0]]
  $region26: #{compute_cost_matrix.1} parent=0
    _
  %s7 = ssub.s32 1, %s5
  %s8 = scalar_select 0, %s7, %s5
  // Predicated region
  $region2: #{compute_cost_matrix.1} parent=0 // pred_check
    _
  $region3: #{compute_cost_matrix.1} parent=0 // pred_check_branch
    %10 = sbr.rel (0) target = $region5
  $region4: #{compute_cost_matrix.1} parent=0 // pred_region
    _
  $region5: #{compute_cost_matrix.1} parent=0 // pred_fallthru
    _
  // Predicated region
  $region6: #{compute_cost_matrix.1} parent=0 // pred_check
    _
  $region7: #{compute_cost_matrix.1} parent=0 // pred_check_branch
    %12 = sbr.rel (0) target = $region9
  $region8: #{compute_cost_matrix.1} parent=0 // pred_region
    _
  $region9: #{compute_cost_matrix.1} parent=0 // pred_fallthru
    _
  // Predicated region
  $region10: #{compute_cost_matrix.1} parent=0 // pred_check
    _
  $region11: #{compute_cost_matrix.1} parent=0 // pred_check_branch
    %14 = sbr.rel (0) target = $region13
  $region12: #{compute_cost_matrix.1} parent=0 // pred_region
    _
  $region13: #{compute_cost_matrix.1} parent=0 // pred_fallthru
    _
  // Predicated region
  $region14: #{compute_cost_matrix.1} parent=0 // pred_check
    _
  $region15: #{compute_cost_matrix.1} parent=0 // pred_check_branch
    %16 = sbr.rel (0) target = $region17
  $region16: #{compute_cost_matrix.1} parent=0 // pred_region
    _
  $region17: #{compute_cost_matrix.1} parent=0 // pred_fallthru
    _
  %v17 = vld [vmem:[%s0] sm:$0xff]
  %v18 = vld [vmem:[%s0 + $0x8] sm:$0xff]
  %v19 = vld [vmem:[%s1] sm:$0x3]
  %21 = vset.pattern.permute.xlu0 0
  %22 = vperm.xlu0 %21, %v17
  %v23 = vpop.permute.xlu0 %22
  %26 = vset.pattern.permute.xlu0 0
  %27 = vperm.xlu0 %26, %v18
  %v28 = vpop.permute.xlu0 %27
  %v30 = vlaneseq
  %v31 = vshrl.u32 %v30, 7
  %v32 = vsub.s32 0, %v31
  %v33 = vrot.slane %v19, %v32
  %v34 = vsub.f32 %v23, %v33
  %v35 = vsub.f32 %v28, %v33
  %v36 = vand.u32 2147483647, %v34
  %v37 = vand.u32 2147483647, %v35
  %38 = vset.pattern.permute.xlu0 1
  %39 = vperm.xlu0 %38, %v17
  %v40 = vpop.permute.xlu0 %39
  %42 = vset.pattern.permute.xlu0 1
  %43 = vperm.xlu0 %42, %v18
  %v44 = vpop.permute.xlu0 %43
  %v46 = vlaneseq
  %v47 = vshrl.u32 %v46, 7
  %v48 = vsub.s32 1, %v47
  %v49 = vrot.slane %v19, %v48
  %v50 = vsub.f32 %v40, %v49
  %v51 = vsub.f32 %v44, %v49
  %v52 = vand.u32 2147483647, %v50
  %v53 = vand.u32 2147483647, %v51
  %v54 = vadd.f32 %v36, %v52
  %v55 = vadd.f32 %v37, %v53
  %v56 = vld [vmem:[%s2] sm:$0xff]
  %v57 = vld [vmem:[%s2 + $0x8] sm:$0xff]
  %v58 = vand.u32 2147483647, %v56
  %v59 = vand.u32 2147483647, %v57
  %v60 = vsub.f32 0.0, %v58
  %v61 = vsub.f32 0.0, %v59
  %v62 = vmul.f32 %v60, 1.442695
  %v63 = vpow.pop %v62
  %v64 = vmul.f32 %v61, 1.442695
  %v65 = vpow.pop %v64
  %v66 = vadd.f32 %v63, 1.0
  %v67 = vadd.f32 %v65, 1.0
  %v68 = vlog2.pop %v66
  %v69 = vmul.f32 %v68, 0.6931472
  %v70 = vlog2.pop %v67
  %v71 = vmul.f32 %v70, 0.6931472
  %v72 = vsub.f32 0.0, %v56
  %v73 = vsub.f32 0.0, %v57
  %v74 = vmax.f32 %v72, 0.0
  %v75 = vmax.f32 %v73, 0.0
  %v76 = vadd.f32 %v74, %v69
  %v77 = vadd.f32 %v75, %v71
  %v78 = vmax.f32 %v56, 0.0
  %v79 = vmax.f32 %v57, 0.0
  %v80 = vadd.f32 %v78, %v69
  %v81 = vadd.f32 %v79, %v71
  %v82 = vxor.u32 %v56, 2147483648
  %v83 = vxor.u32 %v57, 2147483648
  %v84 = vmul.f32 %v82, 1.442695
  %v85 = vpow.pop %v84
  %v86 = vmul.f32 %v83, 1.442695
  %v87 = vpow.pop %v86
  %v88 = vadd.f32 %v85, 1.0
  %v89 = vadd.f32 %v87, 1.0
  %v90 = vrcp.pop %v88
  %v91 = vmul.f32 1.0, %v90
  %v92 = vrcp.pop %v89
  %v93 = vmul.f32 1.0, %v92
  %v94 = vsub.f32 1.0, %v91
  %v95 = vsub.f32 1.0, %v93
  %v96 = vmul.f32 %v94, %v94
  %v97 = vmul.f32 %v95, %v95
  %v98 = vmul.f32 %v96, 0.25
  %v99 = vmul.f32 %v97, 0.25
  %v100 = vmul.f32 %v98, %v76
  %v101 = vmul.f32 %v99, %v77
  %v102 = vmul.f32 %v91, %v91
  %v103 = vmul.f32 %v93, %v93
  %v104 = vmul.f32 %v102, 0.75
  %v105 = vmul.f32 %v103, 0.75
  %v106 = vmul.f32 %v104, %v80
  %v107 = vmul.f32 %v105, %v81
  %v108 = vsub.f32 %v100, %v106
  %v109 = vsub.f32 %v101, %v107
  %v110 = vld [vmem:[%s3] sm:$0xff]
  %v111 = vld [vmem:[%s3 + $0x8] sm:$0xf]
  %vm112 = vcmask 97280
  %v114 = vsel %vm112, %v108, 0
  %v117 = vsel %vm112, %v109, 0
  %vm119 = vcmask 1043456
  %v121 = vsel %vm119, %v111, 0
  %123 = vmatprep.subr.mxu0 0.0
  %124 = vmatpush1.msra.mxu0 %v110
  %125 = vmatprep.subr.mxu0 0.0
  %126 = vmatpush1.msra.mxu0 %v121
  %127 = vmatprep.subr.mxu0 0.0
  %128 = vmatpush1.msra.mxu0 0.0
  %129 = vmatprep.subr.mxu0 0.0
  %130 = vmatpush1.msra.mxu0 0.0
  %131 = vmatprep.subr.mxu0 0.0
  %132 = vmatpush1.msra.mxu0 0.0
  %133 = vmatprep.subr.mxu0 0.0
  %134 = vmatpush1.msra.mxu0 0.0
  %135 = vmatprep.subr.mxu0 0.0
  %136 = vmatpush1.msra.mxu0 0.0
  %137 = vmatprep.subr.mxu0 0.0
  %138 = vmatpush1.msra.mxu0 0.0
  %139 = vmatprep.subr.mxu0 0.0
  %140 = vmatpush1.msra.mxu0 0.0
  %141 = vmatprep.subr.mxu0 0.0
  %142 = vmatpush1.msra.mxu0 0.0
  %143 = vmatprep.subr.mxu0 0.0
  %144 = vmatpush1.msra.mxu0 0.0
  %145 = vmatprep.subr.mxu0 0.0
  %146 = vmatpush1.msra.mxu0 0.0
  %147 = vmatprep.subr.mxu0 0.0
  %148 = vmatpush1.msra.mxu0 0.0
  %149 = vmatprep.subr.mxu0 0.0
  %150 = vmatpush1.msra.mxu0 0.0
  %151 = vmatprep.subr.mxu0 0.0
  %152 = vmatpush1.msra.mxu0 0.0
  %153 = vmatprep.subr.mxu0 0.0
  %154 = vmatpush1.msra.mxu0 0.0
  %155 = vmatprep.subr.mxu0 0.0
  %156 = vmatpush1.msra.mxu0 0.0
  %157 = vmatprep.subr.mxu0 0.0
  %158 = vmatpush1.msra.mxu0 0.0
  %159 = vmatprep.subr.mxu0 0.0
  %160 = vmatpush1.msra.mxu0 0.0
  %161 = vmatprep.subr.mxu0 0.0
  %162 = vmatpush1.msra.mxu0 0.0
  %163 = vmatprep.subr.mxu0 0.0
  %164 = vmatpush1.msra.mxu0 0.0
  %165 = vmatprep.subr.mxu0 0.0
  %166 = vmatpush1.msra.mxu0 0.0
  %167 = vmatprep.subr.mxu0 0.0
  %168 = vmatpush1.msra.mxu0 0.0
  %169 = vmatprep.subr.mxu0 0.0
  %170 = vmatpush1.msra.mxu0 0.0
  %171 = vmatprep.subr.mxu0 0.0
  %172 = vmatpush1.msra.mxu0 0.0
  %173 = vmatprep.subr.mxu0 0.0
  %174 = vmatpush1.msra.mxu0 0.0
  %175 = vmatprep.subr.mxu0 0.0
  %176 = vmatpush1.msra.mxu0 0.0
  %177 = vmatprep.subr.mxu0 0.0
  %178 = vmatpush1.msra.mxu0 0.0
  %179 = vmatprep.subr.mxu0 0.0
  %180 = vmatpush1.msra.mxu0 0.0
  %181 = vmatprep.subr.mxu0 0.0
  %182 = vmatpush1.msra.mxu0 0.0
  %183 = vmatprep.subr.mxu0 0.0
  %184 = vmatpush1.msra.mxu0 0.0
  %185 = vmatprep.subr.mxu0 0.0
  %186 = vmatpush1.msra.mxu0 0.0
  %187 = vmatprep.mubr.f32.mxu0 0.0
  %188 = vmatmul.mubr.f32.gmra.mrb[0].mxu0 %v114
  %v189 = vpop.f32.mrb[0].mxu0
  %v190 = vadd.f32 %v54, %v189
  %v191 = vpop.f32.mrb[0].mxu0
  %192 = vmatprep.mubr.f32.mxu0 0.0
  %193 = vmatmul.mubr.f32.gmra.mrb[0].mxu0 %v117
  %v194 = vpop.f32.mrb[0].mxu0
  %v195 = vadd.f32 %v55, %v194
  %v196 = vpop.f32.mrb[0].mxu0
  %197 = vdwg.mxu0
  %198 = vst [vmem:[%s4] sm:$0xff] %v190
  %199 = vst [vmem:[%s4 + $0x8] sm:$0xff] %v195
  // Predicated region
  $region18: #{compute_cost_matrix.1} parent=0 // pred_check
    _
  $region19: #{compute_cost_matrix.1} parent=0 // pred_check_branch
    %201 = sbr.rel (0) target = $region21
  $region20: #{compute_cost_matrix.1} parent=0 // pred_region
    _
  $region21: #{compute_cost_matrix.1} parent=0 // pred_fallthru
    _
  // Predicated region
  $region22: #{compute_cost_matrix.1} parent=0 // pred_check
    _
  $region23: #{compute_cost_matrix.1} parent=0 // pred_check_branch
    %203 = sbr.rel (0) target = $region25
  $region24: #{compute_cost_matrix.1} parent=0 // pred_region
    _
  $region25: #{compute_cost_matrix.1} parent=0 // pred_fallthru
    _

</llo_original>
